<compile_context>
chip_gen: v5e
topology: v5e:2x2
jax: 0.10.0
libtpu: 0.0.40
codegen_flags: <defaults>
</compile_context>

<pallas_src>
import math

import jax
import jax.numpy as jnp
import numpy as np
from jax.experimental import pallas as pl
from jax.experimental.pallas import tpu as pltpu


def _round_up(x, m):
    return (x + m - 1) // m * m


def _pick_time_block(S, cap=64):
    for t in (64, 32, 16, 8, 4, 2, 1):
        if t <= cap and S % t == 0:
            return t
    return 1


def _pick_row_block(R):
    for t in (512, 256, 128, 64, 32, 16, 8):
        if R % t == 0:
            return t
    return R


def _pick_col_block(N):
    for t in (512, 256, 128):
        if N % t == 0:
            return t
    return N


# --------------------------------------------------------------------------
# Kernel 1: row/column-tiled linear  y = x @ W + b   (embedding layer only)
# --------------------------------------------------------------------------
def _linear_kernel(x_ref, w_ref, b_ref, o_ref):
    acc = jnp.dot(x_ref[...], w_ref[...], preferred_element_type=jnp.float32)
    o_ref[...] = (acc + b_ref[...]).astype(o_ref.dtype)


def linear(x2d, w, b2d, *, out_dtype):
    R, In = x2d.shape
    N = w.shape[1]
    bm = _pick_row_block(R)
    bn = _pick_col_block(N)
    return pl.pallas_call(
        _linear_kernel,
        out_shape=jax.ShapeDtypeStruct((R, N), out_dtype),
        grid_spec=pltpu.PrefetchScalarGridSpec(
            num_scalar_prefetch=0,
            grid=(R // bm, N // bn),
            in_specs=[
                pl.BlockSpec((bm, In), lambda i, j: (i, 0)),
                pl.BlockSpec((In, bn), lambda i, j: (0, j)),
                pl.BlockSpec((1, bn), lambda i, j: (0, j)),
            ],
            out_specs=pl.BlockSpec((bm, bn), lambda i, j: (i, j)),
        ),
        compiler_params=pltpu.CompilerParams(
            dimension_semantics=("parallel", "parallel")),
    )(x2d, w, b2d)


# --------------------------------------------------------------------------
# Kernel 2: fused (input projection + LSTM recurrence) over the sequence.
#
#   Per grid step (one time block of T steps):
#     gx_block = reshape(x_block) @ W_ih + b       -- one big MXU matmul
#     for t in range(T):   gates = gx[t] + h @ W_hh ; LSTM cell update
#
# Gate k occupies columns [k*Hp, (k+1)*Hp) of the 4*Hp-wide block (Hp%128==0).
# W_ih / b / W_hh are resident (constant index map, single-buffered).
# h/c state lives in VMEM scratch and carries across grid steps; the final
# (h_N, c_N) are written only on the last grid step.
# --------------------------------------------------------------------------
def _lstm_fused_kernel(x_ref, wih_ref, b_ref, whh_ref,
                       out_ref, hN_ref, cN_ref,
                       h_scr, c_scr, gx_scr):
    tb = pl.program_id(0)

    @pl.when(tb == 0)
    def _():
        h_scr[...] = jnp.zeros_like(h_scr)
        c_scr[...] = jnp.zeros_like(c_scr)

    T, Bp, Dp = x_ref.shape
    Hp = h_scr.shape[-1]
    G = 4 * Hp

    # Input projection for the whole time block: lane-dense (T*Bp, G) matmul,
    # stored to VMEM scratch (never round-trips through HBM).
    x_blk = x_ref[...].reshape(T * Bp, Dp)
    gx = jnp.dot(x_blk, wih_ref[...], preferred_element_type=jnp.float32)
    gx_scr[...] = (gx + b_ref[...]).reshape(T, Bp, G)

    def step(i, carry):
        h, c = carry
        # Index whh_ref inside the loop (don't keep the whole weight live as a
        # value across the unrolled body); f32 elementwise everywhere (v5e-safe).
        gates = gx_scr[i] + jnp.dot(h.astype(whh_ref.dtype), whh_ref[...],
                                    preferred_element_type=jnp.float32)
        i_g = jax.nn.sigmoid(gates[:, 0 * Hp:1 * Hp])
        f_g = jax.nn.sigmoid(gates[:, 1 * Hp:2 * Hp])
        g_g = jnp.tanh(gates[:, 2 * Hp:3 * Hp])
        o_g = jax.nn.sigmoid(gates[:, 3 * Hp:4 * Hp])
        c = f_g * c + i_g * g_g
        h = o_g * jnp.tanh(c)
        out_ref[i] = h.astype(out_ref.dtype)
        return h, c

    h, c = jax.lax.fori_loop(0, T, step, (h_scr[...], c_scr[...]),
                             unroll=min(T, 8))
    h_scr[...] = h
    c_scr[...] = c

    @pl.when(tb == pl.num_programs(0) - 1)
    def _():
        hN_ref[...] = h
        cN_ref[...] = c


def lstm_layer(x, w_ih, b, w_hh, *, time_block, out_dtype):
    """x: (S, Bp, Dp) -> (outputs (S, Bp, Hp), h_N (Bp, Hp), c_N (Bp, Hp))."""
    S, Bp, Dp = x.shape
    G = w_ih.shape[1]
    Hp = G // 4
    n_blocks = S // time_block
    grid_spec = pltpu.PrefetchScalarGridSpec(
        num_scalar_prefetch=0,
        grid=(n_blocks,),
        in_specs=[
            pl.BlockSpec((time_block, Bp, Dp), lambda tb: (tb, 0, 0)),
            # Resident weights/bias: constant index map -> single-buffer them
            # so production Hp fits v7x's 64 MiB VMEM.
            pl.BlockSpec((Dp, G), lambda tb: (0, 0),
                         pipeline_mode=pl.Buffered(1)),
            pl.BlockSpec((1, G), lambda tb: (0, 0),
                         pipeline_mode=pl.Buffered(1)),
            pl.BlockSpec((Hp, G), lambda tb: (0, 0),
                         pipeline_mode=pl.Buffered(1)),
        ],
        out_specs=[
            pl.BlockSpec((time_block, Bp, Hp), lambda tb: (tb, 0, 0)),
            pl.BlockSpec((Bp, Hp), lambda tb: (0, 0)),
            pl.BlockSpec((Bp, Hp), lambda tb: (0, 0)),
        ],
        scratch_shapes=[
            pltpu.VMEM((Bp, Hp), jnp.float32),           # h state
            pltpu.VMEM((Bp, Hp), jnp.float32),           # c state
            pltpu.VMEM((time_block, Bp, G), jnp.float32),  # gate pre-acts
        ],
    )
    return pl.pallas_call(
        _lstm_fused_kernel,
        out_shape=(
            jax.ShapeDtypeStruct((S, Bp, Hp), out_dtype),
            jax.ShapeDtypeStruct((Bp, Hp), jnp.float32),
            jax.ShapeDtypeStruct((Bp, Hp), jnp.float32),
        ),
        grid_spec=grid_spec,
        compiler_params=pltpu.CompilerParams(
            dimension_semantics=("arbitrary",),
            vmem_limit_bytes=64 * 1024 * 1024,
        ),
    )(x, w_ih, b, w_hh)


# --------------------------------------------------------------------------
# Parameters (raw, PyTorch-equivalent) and lane-aligned kernel copies.
# --------------------------------------------------------------------------
def init_encoder_params(key, input_dim, emb_dim, hid_dim, n_layers):
    params = {}
    k_lin = 1.0 / math.sqrt(input_dim)
    key, k1, k2 = jax.random.split(key, 3)
    params["emb_w"] = jax.random.uniform(
        k1, (input_dim, emb_dim), jnp.float32, -k_lin, k_lin)
    params["emb_b"] = jax.random.uniform(
        k2, (1, emb_dim), jnp.float32, -k_lin, k_lin)

    k_rnn = 1.0 / math.sqrt(hid_dim)
    params["lstm"] = []
    for layer in range(n_layers):
        in_sz = emb_dim if layer == 0 else hid_dim
        key, ka, kb, kc, kd = jax.random.split(key, 5)
        w_ih = jax.random.uniform(ka, (in_sz, 4 * hid_dim),
                                  jnp.float32, -k_rnn, k_rnn)
        w_hh = jax.random.uniform(kb, (hid_dim, 4 * hid_dim),
                                  jnp.float32, -k_rnn, k_rnn)
        b_ih = jax.random.uniform(kc, (4 * hid_dim,),
                                  jnp.float32, -k_rnn, k_rnn)
        b_hh = jax.random.uniform(kd, (4 * hid_dim,),
                                  jnp.float32, -k_rnn, k_rnn)
        params["lstm"].append(
            {"w_ih": w_ih, "w_hh": w_hh, "b": (b_ih + b_hh)[None, :]})
    return params


def _pad_gate_cols(w, H, Hp):
    """(..., 4H) -> (..., 4Hp): gate k moved to columns [k*Hp, k*Hp + H)."""
    if Hp == H:
        return w
    pad_cfg = [(0, 0)] * (w.ndim - 1) + [(0, Hp - H)]
    parts = [jnp.pad(w[..., k * H:(k + 1) * H], pad_cfg) for k in range(4)]
    return jnp.concatenate(parts, axis=-1)


def prepare_kernel_params(raw, emb_dim, hid_dim, dtype):
    """Lane-aligned (Hp/Ep = round_up(.,128)) weight copies in storage `dtype`."""
    H = hid_dim
    Hp = _round_up(H, 128)
    Ep = _round_up(emb_dim, 128)
    kp = {"H": H, "Hp": Hp, "Ep": Ep, "dtype": dtype}
    kp["emb_w"] = jnp.pad(raw["emb_w"],
                          ((0, 0), (0, Ep - emb_dim))).astype(dtype)
    kp["emb_b"] = jnp.pad(raw["emb_b"], ((0, 0), (0, Ep - emb_dim)))  # f32
    kp["lstm"] = []
    for li, lp in enumerate(raw["lstm"]):
        in_raw = lp["w_ih"].shape[0]
        in_p = Ep if li == 0 else Hp
        w_ih = _pad_gate_cols(lp["w_ih"], H, Hp)
        w_ih = jnp.pad(w_ih, ((0, in_p - in_raw), (0, 0))).astype(dtype)
        w_hh = _pad_gate_cols(lp["w_hh"], H, Hp)
        w_hh = jnp.pad(w_hh, ((0, Hp - H), (0, 0))).astype(dtype)
        b = _pad_gate_cols(lp["b"], H, Hp)                    # stays f32
        kp["lstm"].append({"w_ih": w_ih, "w_hh": w_hh, "b": b})
    return kp


# --------------------------------------------------------------------------
# Encoder forward (glue in plain JAX).
# --------------------------------------------------------------------------
def encoder_forward(kp, src):
    """src: (S, B, input_dim) -> (hidden, cell) each (n_layers, B, hid_dim)."""
    S, B, In = src.shape
    H, Hp, Ep = kp["H"], kp["Hp"], kp["Ep"]
    dt = kp["dtype"]
    Bp = _round_up(B, 8)
    if Bp != B:
        src = jnp.pad(src, ((0, 0), (0, Bp - B), (0, 0)))
    T = _pick_time_block(S)

    # Embedding Linear (row/col tiled); dropout (eval mode) == identity.
    x2d = src.reshape(S * Bp, In).astype(dt)
    emb = linear(x2d, kp["emb_w"], kp["emb_b"], out_dtype=dt)   # (S*Bp, Ep)
    layer_in = emb.reshape(S, Bp, Ep)

    hiddens, cells = [], []
    for lp in kp["lstm"]:
        outs, h_n, c_n = lstm_layer(layer_in, lp["w_ih"], lp["b"], lp["w_hh"],
                                    time_block=T, out_dtype=dt)
        hiddens.append(h_n[:B, :H])
        cells.append(c_n[:B, :H])
        layer_in = outs     # inter-layer dropout = identity (eval)
    return (jnp.stack(hiddens, 0).astype(jnp.float32),
            jnp.stack(cells, 0).astype(jnp.float32))


# --------------------------------------------------------------------------
# Pure-JAX reference (full-precision matmuls so the f32 check is meaningful).
# --------------------------------------------------------------------------
def encoder_reference(params, src):
    HI = jax.lax.Precision.HIGHEST
    S, B, Hin = src.shape
    x = jnp.dot(src.reshape(S * B, Hin), params["emb_w"],
                precision=HI) + params["emb_b"]
    x = x.reshape(S, B, -1)
    hiddens, cells = [], []
    layer_in = x
    for lp in params["lstm"]:
        H = lp["w_hh"].shape[0]
        h = jnp.zeros((B, H), jnp.float32)
        c = jnp.zeros((B, H), jnp.float32)

        def step(carry, x_t):
            h, c = carry
            gates = (jnp.dot(x_t, lp["w_ih"], precision=HI)
                     + jnp.dot(h, lp["w_hh"], precision=HI) + lp["b"])
            i_g = jax.nn.sigmoid(gates[:, 0 * H:1 * H])
            f_g = jax.nn.sigmoid(gates[:, 1 * H:2 * H])
            g_g = jnp.tanh(gates[:, 2 * H:3 * H])
            o_g = jax.nn.sigmoid(gates[:, 3 * H:4 * H])
            c = f_g * c + i_g * g_g
            h = o_g * jnp.tanh(c)
            return (h, c), h

        (h, c), outs = jax.lax.scan(step, (h, c), layer_in)
        hiddens.append(h)
        cells.append(c)
        layer_in = outs
    return jnp.stack(hiddens, 0), jnp.stack(cells, 0)


if __name__ == "__main__":
    # Small shapes consistent with the module's forward: src is (S, B, input_dim)
    S, B = 8, 2
    input_dim, emb_dim, hid_dim, n_layers, dropout = 16, 32, 32, 2, 0.5

    key = jax.random.PRNGKey(0)
    key, k_src = jax.random.split(key)
    src = jax.random.normal(k_src, (S, B, input_dim), jnp.float32)

    raw_params = init_encoder_params(key, input_dim, emb_dim, hid_dim, n_layers)
    h_ref, c_ref = encoder_reference(raw_params, src)

    # --- f32 storage path: tight check vs reference ---
    kp_f32 = prepare_kernel_params(raw_params, emb_dim, hid_dim, jnp.float32)
    hidden, cell = encoder_forward(kp_f32, src)
    hidden = jax.block_until_ready(hidden)
    cell = jax.block_until_ready(cell)
    assert hidden.shape == (n_layers, B, hid_dim)
    assert cell.shape == (n_layers, B, hid_dim)
    np.testing.assert_allclose(np.asarray(hidden), np.asarray(h_ref),
                               rtol=1e-4, atol=1e-4)
    np.testing.assert_allclose(np.asarray(cell), np.asarray(c_ref),
                               rtol=1e-4, atol=1e-4)

    # --- bf16 storage path (halved HBM/VMEM traffic): loose check ---
    kp_bf16 = prepare_kernel_params(raw_params, emb_dim, hid_dim, jnp.bfloat16)
    hidden_bf, cell_bf = encoder_forward(kp_bf16, src)
    hidden_bf = jax.block_until_ready(hidden_bf)
    cell_bf = jax.block_until_ready(cell_bf)
    np.testing.assert_allclose(np.asarray(hidden_bf), np.asarray(h_ref),
                               rtol=5e-2, atol=5e-2)
    np.testing.assert_allclose(np.asarray(cell_bf), np.asarray(c_ref),
                               rtol=5e-2, atol=5e-2)

    print("KERNEL_OK")
</pallas_src>

<mosaic_0001>
module attributes {stable_mosaic.version = 11 : i64} {
  func.func @_linear_kernel(%arg0: i32, %arg1: i32, %arg2: memref<64x16xf32, #tpu.memory_space<vmem>>, %arg3: memref<16x128xf32, #tpu.memory_space<vmem>>, %arg4: memref<1x128xf32, #tpu.memory_space<vmem>>, %arg5: memref<64x128xf32, #tpu.memory_space<vmem>>) attributes {dimension_semantics = [#tpu.dimension_semantics<parallel>, #tpu.dimension_semantics<parallel>], iteration_bounds = array<i64: 1, 1>, scalar_prefetch = 0 : i64, scratch_operands = 0 : i64, tpu.core_type = #tpu.core_type<tc>, window_params = [{transform_indices = @transform_0, window_bounds = array<i64: 64, 16>}, {transform_indices = @transform_1, window_bounds = array<i64: 16, 128>}, {transform_indices = @transform_2, window_bounds = array<i64: 1, 128>}, {transform_indices = @transform_3, window_bounds = array<i64: 64, 128>}]} {
    %c0 = arith.constant 0 : index
    %c0_0 = arith.constant 0 : index
    %0 = vector.load %arg2[%c0, %c0_0] : memref<64x16xf32, #tpu.memory_space<vmem>>, vector<64x16xf32>
    %c0_1 = arith.constant 0 : index
    %c0_2 = arith.constant 0 : index
    %1 = vector.load %arg3[%c0_1, %c0_2] : memref<16x128xf32, #tpu.memory_space<vmem>>, vector<16x128xf32>
    %cst = arith.constant dense<0.000000e+00> : vector<64x128xf32>
    %2 = tpu.matmul %0, %1, %cst {dimension_numbers = #tpu.dot_dimension_numbers<[1], [0], [0], [1], [0, 0, 1, 1], [], []>} : vector<64x16xf32>, vector<16x128xf32>, vector<64x128xf32> -> vector<64x128xf32>
    %c0_3 = arith.constant 0 : index
    %c0_4 = arith.constant 0 : index
    %3 = vector.load %arg4[%c0_3, %c0_4] : memref<1x128xf32, #tpu.memory_space<vmem>>, vector<1x128xf32>
    %4 = vector.broadcast %3 : vector<1x128xf32> to vector<64x128xf32>
    %5 = arith.addf %2, %4 : vector<64x128xf32>
    %c0_5 = arith.constant 0 : index
    %c0_6 = arith.constant 0 : index
    %6 = vector.load %arg5[%c0_5, %c0_6] : memref<64x128xf32, #tpu.memory_space<vmem>>, vector<64x128xf32>
    tpu.vector_store %arg5[%c0_5, %c0_6], %5 {strides = array<i32>} : memref<64x128xf32, #tpu.memory_space<vmem>>, vector<64x128xf32>,
    return
  }
  func.func @transform_0(%arg0: i32, %arg1: i32) -> (i32, i32) {
    %c0_i32 = arith.constant 0 : i32
    %c0_i32_0 = arith.constant 0 : i32
    return %arg0, %c0_i32 : i32, i32
  }
  func.func @transform_1(%arg0: i32, %arg1: i32) -> (i32, i32) {
    %c0_i32 = arith.constant 0 : i32
    %c0_i32_0 = arith.constant 0 : i32
    return %c0_i32, %arg1 : i32, i32
  }
  func.func @transform_2(%arg0: i32, %arg1: i32) -> (i32, i32) {
    %c0_i32 = arith.constant 0 : i32
    %c0_i32_0 = arith.constant 0 : i32
    return %c0_i32, %arg1 : i32, i32
  }
  func.func @transform_3(%arg0: i32, %arg1: i32) -> (i32, i32) {
    %c0_i32 = arith.constant 0 : i32
    return %arg0, %arg1 : i32, i32
  }
}

</mosaic_0001>

<llo_original>
// kernel: tpu_custom_call.1
$region0: #{tpu_custom_call.1}
  #allocation0 [shape = 'u32[]', space=smem, size = 0x4, offset = 0x4, fixed_abs, tag = 'smem constant byte address 0x4 - core index']
  #allocation1 [shape = 'u32[72,128]{1,0:T(1,128)}', space=vmem, size = 0x9000, scoped, tag = 'internal scratch']
  %s0 = inlined_call_operand.vmem [shape: f32[64,16], index: 0, kind: input, shape index: {}]
  %s1 = inlined_call_operand.vmem [shape: f32[16,128], index: 1, kind: input, shape index: {}]
  %s2 = inlined_call_operand.vmem [shape: f32[1,128], index: 2, kind: input, shape index: {}]
  %s3 = inlined_call_operand.hbm [shape: f32[64,128], index: 3, kind: output, shape index: {}]
  %s4 = sld [smem:[#allocation0]]
  $region22: #{tpu_custom_call.1} parent=0
    _
  %s6 = ssub.s32 1, %s4
  %s7 = scalar_select 0, %s6, %s4
  $region1: #{tpu_custom_call.1} parent=0
    #allocation2 [shape = 'u8[32768]{0}', space=vmem, size = 0x8000, scoped, tag = 'output window, operand 0, single buffered']
    #allocation3 [shape = 's32[1]{0}', space=sflag, size = 0x4, scoped, tag = 'scoped memory for tpu_custom_call.1']
    %8 = vsyncpa [#allocation3], 0
    // Predicated region
    $region2: #{tpu_custom_call.1} parent=1 // pred_check
      _
    $region3: #{tpu_custom_call.1} parent=1 // pred_check_branch
      %10 = sbr.rel (0) target = $region5
    $region4: #{tpu_custom_call.1} parent=1 // pred_region
      _
    $region5: #{tpu_custom_call.1} parent=1 // pred_fallthru
      _
    // Predicated region
    $region6: #{tpu_custom_call.1} parent=1 // pred_check
      _
    $region7: #{tpu_custom_call.1} parent=1 // pred_check_branch
      %12 = sbr.rel (0) target = $region9
    $region8: #{tpu_custom_call.1} parent=1 // pred_region
      _
    $region9: #{tpu_custom_call.1} parent=1 // pred_fallthru
      _
    // Predicated region
    $region10: #{tpu_custom_call.1} parent=1 // pred_check
      _
    $region11: #{tpu_custom_call.1} parent=1 // pred_check_branch
      %14 = sbr.rel (0) target = $region13
    $region12: #{tpu_custom_call.1} parent=1 // pred_region
      _
    $region13: #{tpu_custom_call.1} parent=1 // pred_fallthru
      _
    %v15 = vld [vmem:[%s0] sm:$0xff]
    %v16 = vld [vmem:[%s0 + $0x8] sm:$0xff]
    %v17 = vld [vmem:[%s0 + $0x10] sm:$0xff]
    %v18 = vld [vmem:[%s0 + $0x18] sm:$0xff]
    %v19 = vld [vmem:[%s0 + $0x20] sm:$0xff]
    %v20 = vld [vmem:[%s0 + $0x28] sm:$0xff]
    %v21 = vld [vmem:[%s0 + $0x30] sm:$0xff]
    %v22 = vld [vmem:[%s0 + $0x38] sm:$0xff]
    %v23 = vld [vmem:[%s1] sm:$0xff]
    %v24 = vld [vmem:[%s1 + $0x8] sm:$0xff]
    %v25 = vld [vmem:[%s2] sm:$0x1]
    %v27 = vperm.slane %v25, 0
    %vm29 = vcmask 130048
    %v31 = vsel %vm29, %v15, 0
    %v34 = vsel %vm29, %v16, 0
    %v37 = vsel %vm29, %v17, 0
    %v40 = vsel %vm29, %v18, 0
    %v43 = vsel %vm29, %v19, 0
    %v46 = vsel %vm29, %v20, 0
    %v49 = vsel %vm29, %v21, 0
    %v52 = vsel %vm29, %v22, 0
    %54 = vmatpush.msra.mxu0 0.0
    %55 = vmatpush.msra.mxu0 0.0
    %56 = vmatpush.msra.mxu0 0.0
    %57 = vmatpush.msra.mxu0 0.0
    %58 = vmatpush.msra.mxu0 0.0
    %59 = vmatpush.msra.mxu0 0.0
    %60 = vmatpush.msra.mxu0 0.0
    %61 = vmatpush.msra.mxu0 0.0
    %62 = vmatpush.msra.mxu0 0.0
    %63 = vmatpush.msra.mxu0 0.0
    %64 = vmatpush.msra.mxu0 0.0
    %65 = vmatpush.msra.mxu0 0.0
    %66 = vmatpush.msra.mxu0 0.0
    %67 = vmatpush.msra.mxu0 0.0
    %68 = vmatpush.msra.mxu0 %v24
    %69 = vmatpush.msra.mxu0 %v23
    %70 = vmatmul.f32.gmra.mxu0 %v31
    %v71 = vpop.f32.mrf.mxu0
    %v72 = vadd.f32 %v27, %v71
    %73 = vmatmul.f32.gmra.mxu0 %v34
    %v74 = vpop.f32.mrf.mxu0
    %v75 = vadd.f32 %v27, %v74
    %76 = vmatmul.f32.gmra.mxu0 %v37
    %v77 = vpop.f32.mrf.mxu0
    %v78 = vadd.f32 %v27, %v77
    %79 = vmatmul.f32.gmra.mxu0 %v40
    %v80 = vpop.f32.mrf.mxu0
    %v81 = vadd.f32 %v27, %v80
    %82 = vmatmul.f32.gmra.mxu0 %v43
    %v83 = vpop.f32.mrf.mxu0
    %v84 = vadd.f32 %v27, %v83
    %85 = vmatmul.f32.gmra.mxu0 %v46
    %v86 = vpop.f32.mrf.mxu0
    %v87 = vadd.f32 %v27, %v86
    %88 = vmatmul.f32.gmra.mxu0 %v49
    %v89 = vpop.f32.mrf.mxu0
    %v90 = vadd.f32 %v27, %v89
    %91 = vmatmul.f32.gmra.mxu0 %v52
    %v92 = vpop.f32.mrf.mxu0
    %v93 = vadd.f32 %v27, %v92
    %94 = vdwg.mxu0
    %95 = vst [vmem:[#allocation2] sm:$0xff] %v72
    %96 = vst [vmem:[#allocation2 + $0x8] sm:$0xff] %v75
    %97 = vst [vmem:[#allocation2 + $0x10] sm:$0xff] %v78
    %98 = vst [vmem:[#allocation2 + $0x18] sm:$0xff] %v81
    %99 = vst [vmem:[#allocation2 + $0x20] sm:$0xff] %v84
    %100 = vst [vmem:[#allocation2 + $0x28] sm:$0xff] %v87
    %101 = vst [vmem:[#allocation2 + $0x30] sm:$0xff] %v90
    %102 = vst [vmem:[#allocation2 + $0x38] sm:$0xff] %v93
    // Predicated region
    $region14: #{tpu_custom_call.1} parent=1 // pred_check
      _
    $region15: #{tpu_custom_call.1} parent=1 // pred_check_branch
      %104 = sbr.rel (0) target = $region17
    $region16: #{tpu_custom_call.1} parent=1 // pred_region
      %106 = vsyncadd [#allocation3], 0
      %s107 = sshll.u32 [#allocation2], 4
      %s108 = int_to_ptr.vmem [resolvable:$true] %s107
      %s109 = sshll.u32 %s3, 4
      %s110 = int_to_ptr.hbm [resolvable:$true] %s109
      %115 = dma.vmem_to_hbm [thread:$0]  %s108, 1024, %s110, [#allocation3], 128, 128, 8
    $region17: #{tpu_custom_call.1} parent=1 // pred_fallthru
      _
    // Predicated region
    $region18: #{tpu_custom_call.1} parent=1 // pred_check
      _
    $region19: #{tpu_custom_call.1} parent=1 // pred_check_branch
      %117 = sbr.rel (0) target = $region21
    $region20: #{tpu_custom_call.1} parent=1 // pred_region
      %119 = dma.done [#allocation3], 1024
    $region21: #{tpu_custom_call.1} parent=1 // pred_fallthru
      _
    %120 = vsyncpa [#allocation3], 1

</llo_original>
